<compile_context>
chip_gen: v7x
topology: tpu7x:2x2x1
jax: 0.10.0
libtpu: 0.0.40
codegen_flags: <defaults>
</compile_context>

<pallas_src>
import functools
import math

import jax
import jax.numpy as jnp
from jax.experimental import pallas as pl
from jax.experimental.pallas import tpu as pltpu

# ---------------- configuration (small, consistent with the module) ----------
B, C, HH, WW = 2, 4, 16, 16          # input image batch, NCHW
IN_DIM = C * HH * WW                 # 1024 (flattened backbone input)
HIDDEN = 32                          # backbone hidden_size
N_RF = 128                           # n_random_features (small synthetic)
N_OUT = 10                           # n_outputs
GP_KERNEL_SCALE = 1.0
LAYER_NORM_EPS = 1e-12
GP_OUTPUT_BIAS = 0.0
GP_INPUT_SCALE = 1.0 / math.sqrt(GP_KERNEL_SCALE)

LANES = 128                          # lane-dense padded output / packed-param width
B_PAD = 8                            # sublane-aligned batch
TM_LARGE = 256                       # batch tile for the grid (scale-up) path


# ------------------------------- kernel --------------------------------------
def sngp_kernel(x_ref, wbb_ref, w_ref, p_ref, o_ref):
    # Packed small f32 params: row 0 = backbone bias (first HIDDEN lanes),
    #                          row 1 = folded random-feature bias brf',
    #                          row 2 = GP output bias (zero-padded to LANES).
    bbb = p_ref[0:1, :HIDDEN]            # (1, HIDDEN)
    brf = p_ref[1:2, :N_RF]              # (1, N_RF)
    bout = p_ref[2:3, :]                 # (1, LANES)

    # Packed bf16 weight slab: rows [0:HIDDEN) = wrf', rows [HIDDEN:HIDDEN+N_RF) = beta'.
    wrf = w_ref[0:HIDDEN, :]                          # (HIDDEN, N_RF) bf16
    beta = w_ref[HIDDEN:HIDDEN + N_RF, :]             # (N_RF, LANES) bf16

    # ----- backbone: latent = x @ Wbb_t^T + bbb (bf16 MXU operands, f32 acc) -
    x_bf = x_ref[...].astype(jnp.bfloat16)            # (TM, IN_DIM)
    latent = jax.lax.dot_general(
        x_bf, wbb_ref[...],
        dimension_numbers=(((1,), (1,)), ((), ())),    # contract last dims (trans_b)
        preferred_element_type=jnp.float32) + bbb      # (TM, HIDDEN) f32

    # ----- LayerNorm core (affine folded into wrf'/brf' at setup time), f32 --
    mean = jnp.mean(latent, axis=-1, keepdims=True)
    centered = latent - mean
    var = jnp.mean(centered * centered, axis=-1, keepdims=True)
    h = centered * jax.lax.rsqrt(var + LAYER_NORM_EPS)

    # ----- random features: phi = cos(h @ wrf' + brf') -----------------------
    proj = jnp.dot(h.astype(jnp.bfloat16), wrf,
                   preferred_element_type=jnp.float32) + brf
    phi = jnp.cos(proj)

    # ----- GP head: out = phi @ beta' + bout (feature scale folded in beta') -
    out = jnp.dot(phi.astype(jnp.bfloat16), beta,
                  preferred_element_type=jnp.float32) + bout
    o_ref[...] = out.astype(o_ref.dtype)


# ---------------------- one-time parameter preparation -----------------------
def prepare_sngp_params(wbb, bbb, gamma, beta_ln, wrf, brf, beta, bout):
    """Runs ONCE at parameter-load time (hoisted off the per-call hot path)."""
    hidden = wbb.shape[1]
    n_rf = wrf.shape[1]
    n_out = beta.shape[1]
    assert hidden <= LANES and n_rf <= LANES and n_out <= LANES

    # Fold LayerNorm affine into the random-feature layer (f32 math).
    wrf_f = wrf * gamma.reshape(hidden, 1)                    # diag(gamma) @ wrf
    brf_f = beta_ln.reshape(1, hidden) @ wrf + brf            # beta_ln @ wrf + brf
    # Fold random-feature scale into the GP head; lane-pad to LANES.
    beta_f = jnp.pad(beta * GP_INPUT_SCALE, ((0, 0), (0, LANES - n_out)))

    # Transposed, lane-dense bf16 backbone weight: (HIDDEN, IN_DIM).
    wbb_t = jnp.asarray(wbb).T.astype(jnp.bfloat16)

    # Single bf16 weight slab (hidden + n_rf, LANES).
    w_slab = jnp.concatenate([wrf_f, beta_f], axis=0).astype(jnp.bfloat16)

    # Single f32 bias slab.
    params = jnp.zeros((3, LANES), dtype=jnp.float32)
    params = params.at[0, :hidden].set(bbb.reshape(-1))
    params = params.at[1, :n_rf].set(brf_f.reshape(-1))
    params = params.at[2, :n_out].set(bout.reshape(-1))

    return dict(wbb_t=wbb_t, w_slab=w_slab, params=params,
                hidden=hidden, n_rf=n_rf, n_out=n_out)


# ------------------------------ forward call ----------------------------------
def _call_gridless(x_pad, wbb_t, w_slab, params, b_pad):
    vmem = pl.BlockSpec(memory_space=pltpu.MemorySpace.VMEM)
    return pl.pallas_call(
        sngp_kernel,
        out_shape=jax.ShapeDtypeStruct((b_pad, LANES), jnp.float32),
        in_specs=[vmem, vmem, vmem, vmem],
        out_specs=vmem,
    )(x_pad, wbb_t, w_slab, params)


def _call_batched(x_pad, wbb_t, w_slab, params, b_pad, tm):
    # Scale-up path: batch-parallel grid so both v7x TensorCores are used.
    return pl.pallas_call(
        sngp_kernel,
        out_shape=jax.ShapeDtypeStruct((b_pad, LANES), jnp.float32),
        grid=(b_pad // tm,),
        in_specs=[
            pl.BlockSpec((tm, x_pad.shape[1]), lambda i: (i, 0)),
            pl.BlockSpec(wbb_t.shape, lambda i: (0, 0)),
            pl.BlockSpec(w_slab.shape, lambda i: (0, 0)),
            pl.BlockSpec(params.shape, lambda i: (0, 0)),
        ],
        out_specs=pl.BlockSpec((tm, LANES), lambda i: (i, 0)),
        compiler_params=pltpu.CompilerParams(dimension_semantics=("parallel",)),
    )(x_pad, wbb_t, w_slab, params)


@functools.partial(jax.jit, static_argnums=(4,))
def _sngp_forward(x_flat, wbb_t, w_slab, params, n_out):
    b, in_dim = x_flat.shape
    b_pad = max(B_PAD, ((b + 7) // 8) * 8)
    # Explicit zero pad (fused inside this jit); zero rows give var=0, h=0 -> no NaN.
    x_pad = jnp.pad(x_flat, ((0, b_pad - b), (0, 0)))

    if b_pad <= TM_LARGE:
        out = _call_gridless(x_pad, wbb_t, w_slab, params, b_pad)
    else:
        b_grid = ((b_pad + TM_LARGE - 1) // TM_LARGE) * TM_LARGE
        if b_grid != b_pad:
            x_pad = jnp.pad(x_pad, ((0, b_grid - b_pad), (0, 0)))
        out = _call_batched(x_pad, wbb_t, w_slab, params, b_grid, TM_LARGE)
    return out[:b, :n_out]


def sngp_forward(x_flat, prep):
    return _sngp_forward(x_flat, prep["wbb_t"], prep["w_slab"], prep["params"],
                         prep["n_out"])


# ------------------------------- references -----------------------------------
def reference_unfolded(x_flat, wbb, bbb, gamma, beta_ln, wrf, brf, beta, bout):
    """Original module math, pure f32."""
    latent = x_flat @ wbb + bbb
    mean = latent.mean(-1, keepdims=True)
    var = ((latent - mean) ** 2).mean(-1, keepdims=True)
    h = (latent - mean) / jnp.sqrt(var + LAYER_NORM_EPS) * gamma + beta_ln
    phi = jnp.cos(h @ wrf + brf) * GP_INPUT_SCALE
    return phi @ beta + bout


def reference_folded(x_flat, prep):
    """Exactly the arithmetic the kernel performs (same bf16-rounded operands)."""
    wbb_t = prep["wbb_t"].astype(jnp.float32)
    w_slab = prep["w_slab"].astype(jnp.float32)
    params = prep["params"]
    hidden, n_rf, n_out = prep["hidden"], prep["n_rf"], prep["n_out"]

    x_r = x_flat.astype(jnp.bfloat16).astype(jnp.float32)
    latent = x_r @ wbb_t.T + params[0:1, :hidden]
    mean = latent.mean(-1, keepdims=True)
    c = latent - mean
    var = (c * c).mean(-1, keepdims=True)
    h = c * jax.lax.rsqrt(var + LAYER_NORM_EPS)
    h_r = h.astype(jnp.bfloat16).astype(jnp.float32)
    proj = h_r @ w_slab[:hidden] + params[1:2, :n_rf]
    phi = jnp.cos(proj)
    phi_r = phi.astype(jnp.bfloat16).astype(jnp.float32)
    out = phi_r @ w_slab[hidden:hidden + n_rf] + params[2:3, :]
    return out[:, :n_out]


# --------------------------------- main ----------------------------------------
if __name__ == "__main__":
    key = jax.random.PRNGKey(0)
    (k_x, k_wbb, k_bbb, k_g, k_bln, k_wrf, k_brf, k_beta) = jax.random.split(key, 8)

    # Input in NCHW, flattened row-major for the synthetic backbone.
    x = jax.random.normal(k_x, (B, C, HH, WW), dtype=jnp.float32)
    x_flat = x.reshape(B, IN_DIM)

    # Backbone linear (deterministic init; spectral norm is a param-setup step).
    wbb = jax.random.normal(k_wbb, (IN_DIM, HIDDEN), dtype=jnp.float32) * 0.02
    bbb = jax.random.normal(k_bbb, (1, HIDDEN), dtype=jnp.float32) * 0.01

    # LayerNorm params (non-trivial values so the affine folding is exercised).
    gamma = 1.0 + 0.05 * jax.random.normal(k_g, (HIDDEN,), dtype=jnp.float32)
    beta_ln = 0.01 * jax.random.normal(k_bln, (HIDDEN,), dtype=jnp.float32)

    # RandomFeatureLinear: weight ~ N(0, 0.05), bias ~ U(0, 2*pi).
    # PyTorch weight is (N_RF, HIDDEN); store transposed (HIDDEN, N_RF).
    wrf = jax.random.normal(k_wrf, (HIDDEN, N_RF), dtype=jnp.float32) * 0.05
    brf = jax.random.uniform(k_brf, (1, N_RF), dtype=jnp.float32,
                             minval=0.0, maxval=2.0 * math.pi)

    # beta: kaiming_uniform_(a=sqrt(5)) on shape (N_RF, N_OUT), fan_in=N_OUT.
    bound = math.sqrt(6.0 / ((1.0 + 5.0) * N_OUT))
    beta = jax.random.uniform(k_beta, (N_RF, N_OUT), dtype=jnp.float32,
                              minval=-bound, maxval=bound)

    bout = jnp.full((1, N_OUT), GP_OUTPUT_BIAS, dtype=jnp.float32)

    # One-time parameter preparation (off the per-call hot path).
    prep = prepare_sngp_params(wbb, bbb, gamma, beta_ln, wrf, brf, beta, bout)

    out = sngp_forward(x_flat, prep)
    out = jax.block_until_ready(out)
    assert out.shape == (B, N_OUT)

    # (1) Tight check against the exact arithmetic the kernel implements
    #     (same bf16-rounded operands, f32 accumulation).
    ref_f = reference_folded(x_flat, prep)
    assert jnp.allclose(out, ref_f, atol=2e-4, rtol=2e-4), \
        float(jnp.max(jnp.abs(out - ref_f)))

    # (2) Looser check against the unfolded, pure-f32 module math
    #     (bf16 operand rounding is the only difference).
    ref_u = reference_unfolded(x_flat, wbb, bbb, gamma, beta_ln,
                               wrf, brf, beta, bout)
    assert jnp.allclose(out, ref_u, atol=5e-2, rtol=5e-2), \
        float(jnp.max(jnp.abs(out - ref_u)))

    print("KERNEL_OK")
</pallas_src>

<mosaic_0001>
module attributes {stable_mosaic.version = 11 : i64} {
  func.func @sngp_kernel(%arg0: memref<8x1024xf32, #tpu.memory_space<vmem>>, %arg1: memref<32x1024xbf16, #tpu.memory_space<vmem>>, %arg2: memref<160x128xbf16, #tpu.memory_space<vmem>>, %arg3: memref<3x128xf32, #tpu.memory_space<vmem>>, %arg4: memref<8x128xf32, #tpu.memory_space<vmem>>) attributes {dimension_semantics = [], scalar_prefetch = 0 : i64, scratch_operands = 0 : i64, tpu.core_type = #tpu.core_type<tc>} {
    %c0 = arith.constant 0 : index
    %c0_0 = arith.constant 0 : index
    %0 = vector.load %arg3[%c0, %c0_0] : memref<3x128xf32, #tpu.memory_space<vmem>>, vector<1x32xf32>
    %c1 = arith.constant 1 : index
    %c0_1 = arith.constant 0 : index
    %1 = vector.load %arg3[%c1, %c0_1] : memref<3x128xf32, #tpu.memory_space<vmem>>, vector<1x128xf32>
    %c2 = arith.constant 2 : index
    %c0_2 = arith.constant 0 : index
    %2 = vector.load %arg3[%c2, %c0_2] : memref<3x128xf32, #tpu.memory_space<vmem>>, vector<1x128xf32>
    %c0_3 = arith.constant 0 : index
    %c0_4 = arith.constant 0 : index
    %3 = vector.load %arg2[%c0_3, %c0_4] : memref<160x128xbf16, #tpu.memory_space<vmem>>, vector<32x128xbf16>
    %c32 = arith.constant 32 : index
    %c0_5 = arith.constant 0 : index
    %4 = vector.load %arg2[%c32, %c0_5] : memref<160x128xbf16, #tpu.memory_space<vmem>>, vector<128x128xbf16>
    %c0_6 = arith.constant 0 : index
    %c0_7 = arith.constant 0 : index
    %5 = vector.load %arg0[%c0_6, %c0_7] : memref<8x1024xf32, #tpu.memory_space<vmem>>, vector<8x1024xf32>
    %6 = arith.truncf %5 : vector<8x1024xf32> to vector<8x1024xbf16>
    %c0_8 = arith.constant 0 : index
    %c0_9 = arith.constant 0 : index
    %7 = vector.load %arg1[%c0_8, %c0_9] : memref<32x1024xbf16, #tpu.memory_space<vmem>>, vector<32x1024xbf16>
    %cst = arith.constant dense<0.000000e+00> : vector<8x32xf32>
    %8 = tpu.matmul %6, %7, %cst {dimension_numbers = #tpu.dot_dimension_numbers<[1], [1], [0], [0], [0, 0, 1, 0], [], []>} : vector<8x1024xbf16>, vector<32x1024xbf16>, vector<8x32xf32> -> vector<8x32xf32>
    %9 = vector.broadcast %0 : vector<1x32xf32> to vector<8x32xf32>
    %10 = arith.addf %8, %9 : vector<8x32xf32>
    %cst_10 = arith.constant dense<0.000000e+00> : vector<8xf32>
    %11 = vector.multi_reduction <add>, %10, %cst_10 [1] : vector<8x32xf32> to vector<8xf32>
    %12 = vector.shape_cast %11 : vector<8xf32> to vector<8x1xf32>
    %cst_11 = arith.constant 3.200000e+01 : f32
    %13 = vector.broadcast %cst_11 : f32 to vector<8x1xf32>
    %14 = arith.divf %12, %13 : vector<8x1xf32>
    %15 = vector.broadcast %14 : vector<8x1xf32> to vector<8x32xf32>
    %16 = arith.subf %10, %15 : vector<8x32xf32>
    %17 = arith.mulf %16, %16 : vector<8x32xf32>
    %cst_12 = arith.constant dense<0.000000e+00> : vector<8xf32>
    %18 = vector.multi_reduction <add>, %17, %cst_12 [1] : vector<8x32xf32> to vector<8xf32>
    %19 = vector.shape_cast %18 : vector<8xf32> to vector<8x1xf32>
    %cst_13 = arith.constant 3.200000e+01 : f32
    %20 = vector.broadcast %cst_13 : f32 to vector<8x1xf32>
    %21 = arith.divf %19, %20 : vector<8x1xf32>
    %cst_14 = arith.constant 9.99999996E-13 : f32
    %22 = vector.broadcast %cst_14 : f32 to vector<8x1xf32>
    %23 = arith.addf %21, %22 : vector<8x1xf32>
    %24 = math.rsqrt %23 : vector<8x1xf32>
    %25 = vector.broadcast %24 : vector<8x1xf32> to vector<8x32xf32>
    %26 = arith.mulf %16, %25 : vector<8x32xf32>
    %27 = arith.truncf %26 : vector<8x32xf32> to vector<8x32xbf16>
    %cst_15 = arith.constant dense<0.000000e+00> : vector<8x128xf32>
    %28 = tpu.matmul %27, %3, %cst_15 {dimension_numbers = #tpu.dot_dimension_numbers<[1], [0], [0], [1], [0, 0, 1, 1], [], []>} : vector<8x32xbf16>, vector<32x128xbf16>, vector<8x128xf32> -> vector<8x128xf32>
    %29 = vector.broadcast %1 : vector<1x128xf32> to vector<8x128xf32>
    %30 = arith.addf %28, %29 : vector<8x128xf32>
    %31 = math.cos %30 : vector<8x128xf32>
    %32 = arith.truncf %31 : vector<8x128xf32> to vector<8x128xbf16>
    %cst_16 = arith.constant dense<0.000000e+00> : vector<8x128xf32>
    %33 = tpu.matmul %32, %4, %cst_16 {dimension_numbers = #tpu.dot_dimension_numbers<[1], [0], [0], [1], [0, 0, 1, 1], [], []>} : vector<8x128xbf16>, vector<128x128xbf16>, vector<8x128xf32> -> vector<8x128xf32>
    %34 = vector.broadcast %2 : vector<1x128xf32> to vector<8x128xf32>
    %35 = arith.addf %33, %34 : vector<8x128xf32>
    %c0_17 = arith.constant 0 : index
    %c0_18 = arith.constant 0 : index
    %36 = vector.load %arg4[%c0_17, %c0_18] : memref<8x128xf32, #tpu.memory_space<vmem>>, vector<8x128xf32>
    tpu.vector_store %arg4[%c0_17, %c0_18], %35 {strides = array<i32>} : memref<8x128xf32, #tpu.memory_space<vmem>>, vector<8x128xf32>,
    return
  }
}

</mosaic_0001>

<llo_original>
// kernel: _sngp_forward.1
$region0: #{_sngp_forward.1}
  #allocation0 [shape = 'u32[]', space=smem, size = 0x4, offset = 0x4, fixed_abs, tag = 'smem constant byte address 0x4 - core index']
  #allocation1 [shape = 'u32[144,128]{1,0:T(1,128)}', space=vmem, size = 0x12000, scoped, tag = 'internal scratch']
  %s0 = inlined_call_operand.vmem [shape: f32[8,1024], index: 0, kind: input, shape index: {}]
  %s1 = inlined_call_operand.hbm [shape: bf16[32,1024], index: 1, kind: input, shape index: {}]
  %s2 = inlined_call_operand.vmem [shape: bf16[160,128], index: 2, kind: input, shape index: {}]
  %s3 = inlined_call_operand.vmem [shape: f32[3,128], index: 3, kind: input, shape index: {}]
  %s4 = inlined_call_operand.vmem [shape: f32[8,128], index: 4, kind: output, shape index: {}]
  %s5 = sld [smem:[#allocation0]]
  $region30: #{_sngp_forward.1} parent=0
    _
  %s7 = ssub.s32 1, %s5
  %s8 = scalar_select 0, %s7, %s5
  $region1: #{_sngp_forward.1} parent=0
    #allocation2 [shape = 'u8[65536]{0}', space=vmem, size = 0x10000, scoped, tag = 'input window, operand 1, single buffered']
    #allocation3 [shape = 's32[1]{0}', space=sflag, size = 0x4, scoped, tag = 'scoped memory for _sngp_forward.1']
    %9 = vsyncpa [#allocation3], 0
    // Predicated region
    $region2: #{_sngp_forward.1} parent=1 // pred_check
      _
    $region3: #{_sngp_forward.1} parent=1 // pred_check_branch
      %11 = sbr.rel (0) target = $region5
    $region4: #{_sngp_forward.1} parent=1 // pred_region
      _
    $region5: #{_sngp_forward.1} parent=1 // pred_fallthru
      _
    // Predicated region
    $region6: #{_sngp_forward.1} parent=1 // pred_check
      _
    $region7: #{_sngp_forward.1} parent=1 // pred_check_branch
      %13 = sbr.rel (0) target = $region9
    $region8: #{_sngp_forward.1} parent=1 // pred_region
      %s15 = ssub.s32 2048, 2048
      %16 = vsyncadd [#allocation3], %s15
      %s17 = sshll.u32 [#allocation2], 4
      %s18 = int_to_ptr.vmem [resolvable:$true] %s17
      %23 = dma.hbm_to_vmem [thread:$0]  %s1, 2048, %s18, [#allocation3], 512, 512, 32
    $region9: #{_sngp_forward.1} parent=1 // pred_fallthru
      _
    // Predicated region
    $region10: #{_sngp_forward.1} parent=1 // pred_check
      _
    $region11: #{_sngp_forward.1} parent=1 // pred_check_branch
      %25 = sbr.rel (0) target = $region13
    $region12: #{_sngp_forward.1} parent=1 // pred_region
      _
    $region13: #{_sngp_forward.1} parent=1 // pred_fallthru
      _
    // Predicated region
    $region14: #{_sngp_forward.1} parent=1 // pred_check
      _
    $region15: #{_sngp_forward.1} parent=1 // pred_check_branch
      %27 = sbr.rel (0) target = $region17
    $region16: #{_sngp_forward.1} parent=1 // pred_region
      _
    $region17: #{_sngp_forward.1} parent=1 // pred_fallthru
      _
    // Predicated region
    $region18: #{_sngp_forward.1} parent=1 // pred_check
      _
    $region19: #{_sngp_forward.1} parent=1 // pred_check_branch
      %29 = sbr.rel (0) target = $region21
    $region20: #{_sngp_forward.1} parent=1 // pred_region
      %30 = dma.done [#allocation3], 2048
    $region21: #{_sngp_forward.1} parent=1 // pred_fallthru
      _
    %v32 = vld [vmem:[%s3] sm:$0x1]
    %v33 = vld [vmem:[%s3 + $0x1] sm:$0x1]
    %v34 = vld [vmem:[%s3 + $0x2] sm:$0x1]
    %v35 = vld [vmem:[%s2] sm:$0xf]
    %v36 = vld [vmem:[%s2 + $0x4] sm:$0xf]
    %v37 = vld [vmem:[%s2 + $0x8] sm:$0xf]
    %v38 = vld [vmem:[%s2 + $0xc] sm:$0xf]
    %v39 = vld [vmem:[%s2 + $0x10] sm:$0xf]
    %v40 = vld [vmem:[%s2 + $0x14] sm:$0xf]
    %v41 = vld [vmem:[%s2 + $0x18] sm:$0xf]
    %v42 = vld [vmem:[%s2 + $0x1c] sm:$0xf]
    %v43 = vld [vmem:[%s2 + $0x20] sm:$0xf]
    %v44 = vld [vmem:[%s2 + $0x24] sm:$0xf]
    %v45 = vld [vmem:[%s2 + $0x28] sm:$0xf]
    %v46 = vld [vmem:[%s2 + $0x2c] sm:$0xf]
    %v47 = vld [vmem:[%s2 + $0x30] sm:$0xf]
    %v48 = vld [vmem:[%s2 + $0x34] sm:$0xf]
    %v49 = vld [vmem:[%s2 + $0x38] sm:$0xf]
    %v50 = vld [vmem:[%s2 + $0x3c] sm:$0xf]
    %v51 = vld [vmem:[%s2 + $0x40] sm:$0xf]
    %v52 = vld [vmem:[%s2 + $0x44] sm:$0xf]
    %v53 = vld [vmem:[%s2 + $0x48] sm:$0xf]
    %v54 = vld [vmem:[%s2 + $0x4c] sm:$0xf]
    %v55 = vld [vmem:[%s0] sm:$0xff]
    %v56 = vld [vmem:[%s0 + $0x8] sm:$0xff]
    %v57 = vld [vmem:[%s0 + $0x10] sm:$0xff]
    %v58 = vld [vmem:[%s0 + $0x18] sm:$0xff]
    %v59 = vld [vmem:[%s0 + $0x20] sm:$0xff]
    %v60 = vld [vmem:[%s0 + $0x28] sm:$0xff]
    %v61 = vld [vmem:[%s0 + $0x30] sm:$0xff]
    %v62 = vld [vmem:[%s0 + $0x38] sm:$0xff]
    %v63 = vpack.c.bf16 %v55, %v55
    %v64 = vpack.c.bf16 %v56, %v56
    %v65 = vpack.c.bf16 %v57, %v57
    %v66 = vpack.c.bf16 %v58, %v58
    %v67 = vpack.c.bf16 %v59, %v59
    %v68 = vpack.c.bf16 %v60, %v60
    %v69 = vpack.c.bf16 %v61, %v61
    %v70 = vpack.c.bf16 %v62, %v62
    %v71 = vld [vmem:[#allocation2] sm:$0xff]
    %v72 = vld [vmem:[#allocation2 + $0x8] sm:$0xff]
    %v73 = vld [vmem:[#allocation2 + $0x10] sm:$0xff]
    %v74 = vld [vmem:[#allocation2 + $0x18] sm:$0xff]
    %v75 = vld [vmem:[#allocation2 + $0x20] sm:$0xff]
    %v76 = vld [vmem:[#allocation2 + $0x28] sm:$0xff]
    %v77 = vld [vmem:[#allocation2 + $0x30] sm:$0xff]
    %v78 = vld [vmem:[#allocation2 + $0x38] sm:$0xff]
    %v79 = vld [vmem:[#allocation2 + $0x40] sm:$0xff]
    %v80 = vld [vmem:[#allocation2 + $0x48] sm:$0xff]
    %v81 = vld [vmem:[#allocation2 + $0x50] sm:$0xff]
    %v82 = vld [vmem:[#allocation2 + $0x58] sm:$0xff]
    %v83 = vld [vmem:[#allocation2 + $0x60] sm:$0xff]
    %v84 = vld [vmem:[#allocation2 + $0x68] sm:$0xff]
    %v85 = vld [vmem:[#allocation2 + $0x70] sm:$0xff]
    %v86 = vld [vmem:[#allocation2 + $0x78] sm:$0xff]
    %v87 = vlaneseq
    %v88 = vshrl.u32 %v87, 7
    %v89 = vsub.s32 0, %v88
    %v90 = vrot.slane %v32, %v89
    %v107 = vunpack.c.l.b16 %v71
    %v108 = vunpack.c.h.b16 %v71
    %v109 = vunpack.c.l.b16 %v72
    %v110 = vunpack.c.h.b16 %v72
    %v111 = vunpack.c.l.b16 %v73
    %v112 = vunpack.c.h.b16 %v73
    %v113 = vunpack.c.l.b16 %v74
    %v114 = vunpack.c.h.b16 %v74
    %v115 = vunpack.c.l.b16 %v75
    %v116 = vunpack.c.h.b16 %v75
    %v117 = vunpack.c.l.b16 %v76
    %v118 = vunpack.c.h.b16 %v76
    %v119 = vunpack.c.l.b16 %v77
    %v120 = vunpack.c.h.b16 %v77
    %v121 = vunpack.c.l.b16 %v78
    %v122 = vunpack.c.h.b16 %v78
    %v123 = vunpack.c.l.b16 %v79
    %v124 = vunpack.c.h.b16 %v79
    %v125 = vunpack.c.l.b16 %v80
    %v126 = vunpack.c.h.b16 %v80
    %v127 = vunpack.c.l.b16 %v81
    %v128 = vunpack.c.h.b16 %v81
    %v129 = vunpack.c.l.b16 %v82
    %v130 = vunpack.c.h.b16 %v82
    %v131 = vunpack.c.l.b16 %v83
    %v132 = vunpack.c.h.b16 %v83
    %v133 = vunpack.c.l.b16 %v84
    %v134 = vunpack.c.h.b16 %v84
    %v135 = vunpack.c.l.b16 %v85
    %v136 = vunpack.c.h.b16 %v85
    %v137 = vunpack.c.l.b16 %v86
    %v138 = vunpack.c.h.b16 %v86
    %v139 = vpack.c.b16 %v115, %v107
    %v140 = vpack.c.b16 %v116, %v108
    %v141 = vpack.c.b16 %v117, %v109
    %v142 = vpack.c.b16 %v118, %v110
    %v143 = vpack.c.b16 %v119, %v111
    %v144 = vpack.c.b16 %v120, %v112
    %v145 = vpack.c.b16 %v121, %v113
    %v146 = vpack.c.b16 %v122, %v114
    %v147 = vpack.c.b16 %v131, %v123
    %v148 = vpack.c.b16 %v132, %v124
    %v149 = vpack.c.b16 %v133, %v125
    %v150 = vpack.c.b16 %v134, %v126
    %v151 = vpack.c.b16 %v135, %v127
    %v152 = vpack.c.b16 %v136, %v128
    %v153 = vpack.c.b16 %v137, %v129
    %v154 = vpack.c.b16 %v138, %v130
    %171 = vmatprep.subr.bf16.mxu0 %v140
    %172 = vmatpush1.bf16.xpose.msra.mxu0 %v139
    %173 = vmatprep.subr.bf16.mxu0 %v148
    %174 = vmatpush1.bf16.xpose.msra.mxu0 %v147
    %175 = vmatprep.subr.bf16.mxu0 0
    %176 = vmatpush1.bf16.xpose.msra.mxu0 0
    %177 = vmatprep.subr.bf16.mxu0 0
    %178 = vmatpush1.bf16.xpose.msra.mxu0 0
    %179 = vmatprep.subr.bf16.mxu0 0
    %180 = vmatpush1.bf16.xpose.msra.mxu0 0
    %181 = vmatprep.subr.bf16.mxu0 0
    %182 = vmatpush1.bf16.xpose.msra.mxu0 0
    %183 = vmatprep.subr.bf16.mxu0 0
    %184 = vmatpush1.bf16.xpose.msra.mxu0 0
    %185 = vmatprep.subr.bf16.mxu0 0
    %186 = vmatpush1.bf16.xpose.msra.mxu0 0
    %187 = vmatprep.subr.bf16.mxu0 0
    %188 = vmatpush1.bf16.xpose.msra.mxu0 0
    %189 = vmatprep.subr.bf16.mxu0 0
    %190 = vmatpush1.bf16.xpose.msra.mxu0 0
    %191 = vmatprep.subr.bf16.mxu0 0
    %192 = vmatpush1.bf16.xpose.msra.mxu0 0
    %193 = vmatprep.subr.bf16.mxu0 0
    %194 = vmatpush1.bf16.xpose.msra.mxu0 0
    %195 = vmatprep.subr.bf16.mxu0 0
    %196 = vmatpush1.bf16.xpose.msra.mxu0 0
    %197 = vmatprep.subr.bf16.mxu0 0
    %198 = vmatpush1.bf16.xpose.msra.mxu0 0
    %199 = vmatprep.subr.bf16.mxu0 0
    %200 = vmatpush1.bf16.xpose.msra.mxu0 0
    %201 = vmatprep.subr.bf16.mxu0 0
    %202 = vmatpush1.bf16.xpose.msra.mxu0 0
    %203 = vmatprep.mubr.bf16.mxu0 %v64
    %204 = vmatmul.mubr.bf16.gmra.mrb[0].mxu0 %v63
    %v205 = vpop.f32.mrb[0].mxu0
    %v206 = vadd.f32 %v90, %v205
    %v207 = vpop.f32.mrb[0].mxu0
    %v208 = vpop.f32.mrb[0].mxu0
    %v209 = vpop.f32.mrb[0].mxu0
    %210 = vdwg.mxu0
    %211 = vmatprep.subr.bf16.mxu0 %v142
    %212 = vmatpush1.bf16.xpose.msra.mxu0 %v141
    %213 = vmatprep.subr.bf16.mxu0 %v150
    %214 = vmatpush1.bf16.xpose.msra.mxu0 %v149
    %215 = vmatprep.subr.bf16.mxu0 0
    %216 = vmatpush1.bf16.xpose.msra.mxu0 0
    %217 = vmatprep.subr.bf16.mxu0 0
    %218 = vmatpush1.bf16.xpose.msra.mxu0 0
    %219 = vmatprep.subr.bf16.mxu0 0
    %220 = vmatpush1.bf16.xpose.msra.mxu0 0
    %221 = vmatprep.subr.bf16.mxu0 0
    %222 = vmatpush1.bf16.xpose.msra.mxu0 0
    %223 = vmatprep.subr.bf16.mxu0 0
    %224 = vmatpush1.bf16.xpose.msra.mxu0 0
    %225 = vmatprep.subr.bf16.mxu0 0
    %226 = vmatpush1.bf16.xpose.msra.mxu0 0
    %227 = vmatprep.subr.bf16.mxu0 0
    %228 = vmatpush1.bf16.xpose.msra.mxu0 0
    %229 = vmatprep.subr.bf16.mxu0 0
    %230 = vmatpush1.bf16.xpose.msra.mxu0 0
    %231 = vmatprep.subr.bf16.mxu0 0
    %232 = vmatpush1.bf16.xpose.msra.mxu0 0
    %233 = vmatprep.subr.bf16.mxu0 0
    %234 = vmatpush1.bf16.xpose.msra.mxu0 0
    %235 = vmatprep.subr.bf16.mxu0 0
    %236 = vmatpush1.bf16.xpose.msra.mxu0 0
    %237 = vmatprep.subr.bf16.mxu0 0
    %238 = vmatpush1.bf16.xpose.msra.mxu0 0
    %239 = vmatprep.subr.bf16.mxu0 0
    %240 = vmatpush1.bf16.xpose.msra.mxu0 0
    %241 = vmatprep.subr.bf16.mxu0 0
    %242 = vmatpush1.bf16.xpose.msra.mxu0 0
    %243 = vmatprep.mubr.bf16.mxu0 %v66
    %244 = vmatmul.mubr.bf16.gmra.mrb[0].mxu0 %v65
    %v245 = vpop.f32.mrb[0].mxu0
    %v246 = vadd.f32 %v206, %v245
    %v247 = vpop.f32.mrb[0].mxu0
    %v248 = vpop.f32.mrb[0].mxu0
    %v249 = vpop.f32.mrb[0].mxu0
    %250 = vdwg.mxu0
    %251 = vmatprep.subr.bf16.mxu0 %v144
    %252 = vmatpush1.bf16.xpose.msra.mxu0 %v143
    %253 = vmatprep.subr.bf16.mxu0 %v152
    %254 = vmatpush1.bf16.xpose.msra.mxu0 %v151
    %255 = vmatprep.subr.bf16.mxu0 0
    %256 = vmatpush1.bf16.xpose.msra.mxu0 0
    %257 = vmatprep.subr.bf16.mxu0 0
    %258 = vmatpush1.bf16.xpose.msra.mxu0 0
    %259 = vmatprep.subr.bf16.mxu0 0
    %260 = vmatpush1.bf16.xpose.msra.mxu0 0
    %261 = vmatprep.subr.bf16.mxu0 0
    %262 = vmatpush1.bf16.xpose.msra.mxu0 0
    %263 = vmatprep.subr.bf16.mxu0 0
    %264 = vmatpush1.bf16.xpose.msra.mxu0 0
    %265 = vmatprep.subr.bf16.mxu0 0
    %266 = vmatpush1.bf16.xpose.msra.mxu0 0
    %267 = vmatprep.subr.bf16.mxu0 0
    %268 = vmatpush1.bf16.xpose.msra.mxu0 0
    %269 = vmatprep.subr.bf16.mxu0 0
    %270 = vmatpush1.bf16.xpose.msra.mxu0 0
    %271 = vmatprep.subr.bf16.mxu0 0
    %272 = vmatpush1.bf16.xpose.msra.mxu0 0
    %273 = vmatprep.subr.bf16.mxu0 0
    %274 = vmatpush1.bf16.xpose.msra.mxu0 0
    %275 = vmatprep.subr.bf16.mxu0 0
    %276 = vmatpush1.bf16.xpose.msra.mxu0 0
    %277 = vmatprep.subr.bf16.mxu0 0
    %278 = vmatpush1.bf16.xpose.msra.mxu0 0
    %279 = vmatprep.subr.bf16.mxu0 0
    %280 = vmatpush1.bf16.xpose.msra.mxu0 0
    %281 = vmatprep.subr.bf16.mxu0 0
    %282 = vmatpush1.bf16.xpose.msra.mxu0 0
    %283 = vmatprep.mubr.bf16.mxu0 %v68
    %284 = vmatmul.mubr.bf16.gmra.mrb[0].mxu0 %v67
    %v285 = vpop.f32.mrb[0].mxu0
    %v286 = vadd.f32 %v246, %v285
    %v287 = vpop.f32.mrb[0].mxu0
    %v288 = vpop.f32.mrb[0].mxu0
    %v289 = vpop.f32.mrb[0].mxu0
    %290 = vdwg.mxu0
    %291 = vmatprep.subr.bf16.mxu0 %v146
    %292 = vmatpush1.bf16.xpose.msra.mxu0 %v145
    %293 = vmatprep.subr.bf16.mxu0 %v154
    %294 = vmatpush1.bf16.xpose.msra.mxu0 %v153
    %295 = vmatprep.subr.bf16.mxu0 0
    %296 = vmatpush1.bf16.xpose.msra.mxu0 0
    %297 = vmatprep.subr.bf16.mxu0 0
    %298 = vmatpush1.bf16.xpose.msra.mxu0 0
    %299 = vmatprep.subr.bf16.mxu0 0
    %300 = vmatpush1.bf16.xpose.msra.mxu0 0
    %301 = vmatprep.subr.bf16.mxu0 0
    %302 = vmatpush1.bf16.xpose.msra.mxu0 0
    %303 = vmatprep.subr.bf16.mxu0 0
    %304 = vmatpush1.bf16.xpose.msra.mxu0 0
    %305 = vmatprep.subr.bf16.mxu0 0
    %306 = vmatpush1.bf16.xpose.msra.mxu0 0
    %307 = vmatprep.subr.bf16.mxu0 0
    %308 = vmatpush1.bf16.xpose.msra.mxu0 0
    %309 = vmatprep.subr.bf16.mxu0 0
    %310 = vmatpush1.bf16.xpose.msra.mxu0 0
    %311 = vmatprep.subr.bf16.mxu0 0
    %312 = vmatpush1.bf16.xpose.msra.mxu0 0
    %313 = vmatprep.subr.bf16.mxu0 0
    %314 = vmatpush1.bf16.xpose.msra.mxu0 0
    %315 = vmatprep.subr.bf16.mxu0 0
    %316 = vmatpush1.bf16.xpose.msra.mxu0 0
    %317 = vmatprep.subr.bf16.mxu0 0
    %318 = vmatpush1.bf16.xpose.msra.mxu0 0
    %319 = vmatprep.subr.bf16.mxu0 0
    %320 = vmatpush1.bf16.xpose.msra.mxu0 0
    %321 = vmatprep.subr.bf16.mxu0 0
    %322 = vmatpush1.bf16.xpose.msra.mxu0 0
    %323 = vmatprep.mubr.bf16.mxu0 %v70
    %324 = vmatmul.mubr.bf16.gmra.mrb[0].mxu0 %v69
    %v325 = vpop.f32.mrb[0].mxu0
    %v326 = vadd.f32 %v286, %v325
    %v327 = vpop.f32.mrb[0].mxu0
    %v328 = vpop.f32.mrb[0].mxu0
    %v329 = vpop.f32.mrb[0].mxu0
    %330 = vdwg.mxu0
    %vm331 = vcmask 261120
    %v332 = vsel %vm331, %v326, 0.0
    %333 = vadd.xlane.f32.xlu0 %v332
    %v334 = vpop.xlane.xlu0 %333
    %v335 = vrcp.pop 32.0
    %v336 = vmul.f32 %v334, %v335
    %v337 = vsub.f32 %v326, %v336
    %v338 = vmul.f32 %v337, %v337
    %v339 = vsel %vm331, %v338, 0.0
    %340 = vadd.xlane.f32.xlu0 %v339
    %v341 = vpop.xlane.xlu0 %340
    %v342 = vmul.f32 %v341, %v335
    %v343 = vadd.f32 %v342, 1e-12
    %v344 = vrsqrt.pop %v343
    %v345 = vmul.f32 %v337, %v344
    %v346 = vpack.c.bf16 %v345, %v345
    %v347 = vlaneseq
    %v348 = vshrl.u32 %v347, 7
    %v349 = vsub.s32 0, %v348
    %v350 = vrot.slane %v33, %v349
    %v355 = vunpack.c.l.b16 %v35
    %v356 = vunpack.c.l.b16 %v36
    %v357 = vunpack.c.l.b16 %v37
    %v358 = vunpack.c.l.b16 %v38
    %v359 = vpack.c.b16 %v356, %v355
    %v360 = vpack.c.b16 %v358, %v357
    %v364 = vsel %vm331, %v346, 0
    %366 = vmatprep.subr.bf16.mxu0 0
    %367 = vmatpush1.bf16.msra.mxu0 %v359
    %368 = vmatprep.subr.bf16.mxu0 0
    %369 = vmatpush1.bf16.msra.mxu0 %v360
    %370 = vmatprep.subr.bf16.mxu0 0
    %371 = vmatpush1.bf16.msra.mxu0 0
    %372 = vmatprep.subr.bf16.mxu0 0
    %373 = vmatpush1.bf16.msra.mxu0 0
    %374 = vmatprep.subr.bf16.mxu0 0
    %375 = vmatpush1.bf16.msra.mxu0 0
    %376 = vmatprep.subr.bf16.mxu0 0
    %377 = vmatpush1.bf16.msra.mxu0 0
    %378 = vmatprep.subr.bf16.mxu0 0
    %379 = vmatpush1.bf16.msra.mxu0 0
    %380 = vmatprep.subr.bf16.mxu0 0
    %381 = vmatpush1.bf16.msra.mxu0 0
    %382 = vmatprep.subr.bf16.mxu0 0
    %383 = vmatpush1.bf16.msra.mxu0 0
    %384 = vmatprep.subr.bf16.mxu0 0
    %385 = vmatpush1.bf16.msra.mxu0 0
    %386 = vmatprep.subr.bf16.mxu0 0
    %387 = vmatpush1.bf16.msra.mxu0 0
    %388 = vmatprep.subr.bf16.mxu0 0
    %389 = vmatpush1.bf16.msra.mxu0 0
    %390 = vmatprep.subr.bf16.mxu0 0
    %391 = vmatpush1.bf16.msra.mxu0 0
    %392 = vmatprep.subr.bf16.mxu0 0
    %393 = vmatpush1.bf16.msra.mxu0 0
    %394 = vmatprep.subr.bf16.mxu0 0
    %395 = vmatpush1.bf16.msra.mxu0 0
    %396 = vmatprep.subr.bf16.mxu0 0
    %397 = vmatpush1.bf16.msra.mxu0 0
    %398 = vmatprep.mubr.bf16.mxu0 0
    %399 = vmatmul.mubr.bf16.gmra.mrb[0].mxu0 %v364
    %v400 = vpop.f32.mrb[0].mxu0
    %v401 = vadd.f32 %v350, %v400
    %v402 = vpop.f32.mrb[0].mxu0
    %v403 = vpop.f32.mrb[0].mxu0
    %v404 = vpop.f32.mrb[0].mxu0
    %405 = vdwg.mxu0
    %v406 = vand.u32 2147483647, %v401
    %vm407 = vcmp.le.f32.partialorder %v406, 0.7853982
    %vm408 = vcmp.lt.s32.totalorder %v401, 0
    %v409 = vand.u32 %v401, 2139095040
    %v410 = vshrl.u32 %v409, 23
    %v411 = vsub.s32 %v410, 127
    %v412 = vand.u32 2147483647, %v401
    %v413 = vand.u32 %v412, 8388607
    %v414 = vor.u32 %v413, 8388608
    %v415 = vsub.s32 0, %v414
    %v416 = vadd.s32 %v411, 1
    %vm417 = vcmp.gt.s32.totalorder %v416, 0
    %v418 = vsel %vm417, %v416, 0
    %v419 = vshrl.u32 %v418, 5
    %v420 = vand.u32 %v418, 31
    %v421 = vsub.s32 32, %v420
    %v422 = vshrl.u32 683565275, %v421
    %v423 = vshll.u32 683565275, %v420
    %v424 = vshrl.u32 2475754826, %v421
    %v425 = vor.u32 %v423, %v424
    %v426 = vshll.u32 2475754826, %v420
    %v427 = vshrl.u32 2131351028, %v421
    %v428 = vor.u32 %v426, %v427
    %v429 = vshll.u32 2131351028, %v420
    %v430 = vshrl.u32 2102212464, %v421
    %v431 = vor.u32 %v429, %v430
    %v432 = vshll.u32 2102212464, %v420
    %v433 = vshrl.u32 920167782, %v421
    %v434 = vor.u32 %v432, %v433
    %v435 = vshll.u32 920167782, %v420
    %v436 = vshrl.u32 1326507024, %v421
    %v437 = vor.u32 %v435, %v436
    %vm438 = vcmp.lt.s32.totalorder %v419, 1
    %vm439 = vcmp.lt.s32.totalorder %v419, 2
    %vm440 = vcmp.lt.s32.totalorder %v419, 3
    %vm441 = vcmp.lt.s32.totalorder %v419, 4
    %v442 = vsel %vm438, %v422, %v425
    %v443 = vsel %vm441, %v431, 2102212464
    %v444 = vsel %vm440, %v428, %v443
    %v445 = vsel %vm439, %v442, %v444
    %v446 = vsel %vm438, %v425, %v428
    %v447 = vsel %vm441, %v434, 920167782
    %v448 = vsel %vm440, %v431, %v447
    %v449 = vsel %vm439, %v446, %v448
    %v450 = vsel %vm438, %v428, %v431
    %v451 = vsel %vm441, %v437, 1326507024
    %v452 = vsel %vm440, %v434, %v451
    %v453 = vsel %vm439, %v450, %v452
    %v454 = vshll.u32 %v414, 8
    %v455 = vmul.u32.u64.compose %v454, %v453
    %v456 = vextract.low.u32 %v455
    %v457 = vextract.high.u32 %v455
    %v458 = vmul.u32.u64.compose %v454, %v449
    %v459 = vextract.low.u32 %v458
    %v460 = vextract.high.u32 %v458
    %v461 = vmul.u32 %v454, %v445
    %v462 = vadd.s32 %v457, %v459
    %vm463 = vc.u32 %v457, %v459
    %v464 = vadd.s32 %v460, 1
    %v465 = vsel %vm463, %v464, %v460
    %v466 = vadd.s32 %v461, %v465
    %v467 = vadd.s32 %v466, 536870912
    %v468 = vshrl.u32 %v467, 30
    %v469 = vshll.u32 %v468, 30
    %v470 = vsub.s32 %v466, %v469
    %vm471 = vcmp.lt.s32.totalorder %v470, 0
    %v472 = vsub.s32 0, %v470
    %v473 = vsel %vm471, %v472, %v470
    %v474 = vclz %v473
    %v475 = vsub.s32 %v474, 2
    %vm476 = vcmp.gt.s32.totalorder 0, %v475
    %v477 = vsel %vm476, 0, %v475
    %v478 = vsub.s32 32, %v477
    %v479 = vshll.u32 %v470, %v477
    %v480 = vshrl.u32 %v462, %v478
    %v481 = vor.u32 %v479, %v480
    %v482 = vsub.s32 4294967266, %v477
    %v483 = vadd.s32 %v482, 127
    %v484 = vshll.u32 %v483, 23
    %v485 = vor.u32 4788187, %v484
    %v486 = vand.u32 2147483647, %v485
    %v488 = vcvt.s32.f32 %v481
    %v489 = vmul.f32 %v488, %v486
    %v490 = vxor.u32 %v489, 2147483648
    %v491 = vsel %vm408, %v490, %v489
    %v492 = vsub.s32 4, %v468
    %v493 = vsel %vm408, %v492, %v468
    %v494 = vsel %vm407, %v401, %v491
    %v495 = vsel %vm407, 0, %v493
    %v496 = vcosq.f32.pop %v494
    %v497 = vsinq.f32.pop %v494
    %vm498 = vweird.f32 %v401
    %v499 = vand.u32 %v495, 3
    %vm500 = vcmp.lt.s32.totalorder %v499, 2
    %vm501 = vcmp.eq.s32.totalorder %v499, 0
    %v502 = vxor.u32 %v497, 2147483648
    %v503 = vsel %vm501, %v496, %v502
    %vm504 = vcmp.eq.s32.totalorder %v499, 2
    %v505 = vxor.u32 %v496, 2147483648
    %v506 = vsel %vm504, %v505, %v497
    %v507 = vsel %vm500, %v503, %v506
    %v508 = vsel %vm498, nan, %v507
    %v509 = vpack.c.bf16 %v508, %v508
    %v510 = vlaneseq
    %v511 = vshrl.u32 %v510, 7
    %v512 = vsub.s32 0, %v511
    %v513 = vrot.slane %v34, %v512
    %v530 = vunpack.c.l.b16 %v39
    %v531 = vunpack.c.l.b16 %v40
    %v532 = vunpack.c.l.b16 %v41
    %v533 = vunpack.c.l.b16 %v42
    %v534 = vunpack.c.l.b16 %v43
    %v535 = vunpack.c.l.b16 %v44
    %v536 = vunpack.c.l.b16 %v45
    %v537 = vunpack.c.l.b16 %v46
    %v538 = vunpack.c.l.b16 %v47
    %v539 = vunpack.c.l.b16 %v48
    %v540 = vunpack.c.l.b16 %v49
    %v541 = vunpack.c.l.b16 %v50
    %v542 = vunpack.c.l.b16 %v51
    %v543 = vunpack.c.l.b16 %v52
    %v544 = vunpack.c.l.b16 %v53
    %v545 = vunpack.c.l.b16 %v54
    %v546 = vpack.c.b16 %v531, %v530
    %v547 = vpack.c.b16 %v533, %v532
    %v548 = vpack.c.b16 %v535, %v534
    %v549 = vpack.c.b16 %v537, %v536
    %v550 = vpack.c.b16 %v539, %v538
    %v551 = vpack.c.b16 %v541, %v540
    %v552 = vpack.c.b16 %v543, %v542
    %v553 = vpack.c.b16 %v545, %v544
    %562 = vmatprep.subr.bf16.mxu0 0
    %563 = vmatpush1.bf16.msra.mxu0 %v546
    %564 = vmatprep.subr.bf16.mxu0 0
    %565 = vmatpush1.bf16.msra.mxu0 %v547
    %566 = vmatprep.subr.bf16.mxu0 0
    %567 = vmatpush1.bf16.msra.mxu0 %v548
    %568 = vmatprep.subr.bf16.mxu0 0
    %569 = vmatpush1.bf16.msra.mxu0 %v549
    %570 = vmatprep.subr.bf16.mxu0 0
    %571 = vmatpush1.bf16.msra.mxu0 %v550
    %572 = vmatprep.subr.bf16.mxu0 0
    %573 = vmatpush1.bf16.msra.mxu0 %v551
    %574 = vmatprep.subr.bf16.mxu0 0
    %575 = vmatpush1.bf16.msra.mxu0 %v552
    %576 = vmatprep.subr.bf16.mxu0 0
    %577 = vmatpush1.bf16.msra.mxu0 %v553
    %578 = vmatprep.subr.bf16.mxu0 0
    %579 = vmatpush1.bf16.msra.mxu0 0
    %580 = vmatprep.subr.bf16.mxu0 0
    %581 = vmatpush1.bf16.msra.mxu0 0
    %582 = vmatprep.subr.bf16.mxu0 0
    %583 = vmatpush1.bf16.msra.mxu0 0
    %584 = vmatprep.subr.bf16.mxu0 0
    %585 = vmatpush1.bf16.msra.mxu0 0
    %586 = vmatprep.subr.bf16.mxu0 0
    %587 = vmatpush1.bf16.msra.mxu0 0
    %588 = vmatprep.subr.bf16.mxu0 0
    %589 = vmatpush1.bf16.msra.mxu0 0
    %590 = vmatprep.subr.bf16.mxu0 0
    %591 = vmatpush1.bf16.msra.mxu0 0
    %592 = vmatprep.subr.bf16.mxu0 0
    %593 = vmatpush1.bf16.msra.mxu0 0
    %594 = vmatprep.mubr.bf16.mxu0 0
    %595 = vmatmul.mubr.bf16.gmra.mrb[0].mxu0 %v509
    %v596 = vpop.f32.mrb[0].mxu0
    %v597 = vadd.f32 %v513, %v596
    %v598 = vpop.f32.mrb[0].mxu0
    %v599 = vpop.f32.mrb[0].mxu0
    %v600 = vpop.f32.mrb[0].mxu0
    %601 = vdwg.mxu0
    %602 = vst [vmem:[%s4] sm:$0xff] %v597
    // Predicated region
    $region22: #{_sngp_forward.1} parent=1 // pred_check
      _
    $region23: #{_sngp_forward.1} parent=1 // pred_check_branch
      %604 = sbr.rel (0) target = $region25
    $region24: #{_sngp_forward.1} parent=1 // pred_region
      _
    $region25: #{_sngp_forward.1} parent=1 // pred_fallthru
      _
    // Predicated region
    $region26: #{_sngp_forward.1} parent=1 // pred_check
      _
    $region27: #{_sngp_forward.1} parent=1 // pred_check_branch
      %606 = sbr.rel (0) target = $region29
    $region28: #{_sngp_forward.1} parent=1 // pred_region
      _
    $region29: #{_sngp_forward.1} parent=1 // pred_fallthru
      _
    %607 = vsyncpa [#allocation3], 1

</llo_original>
